<compile_context>
chip_gen: v7x
topology: tpu7x:2x2x1
jax: 0.10.0
libtpu: 0.0.40
codegen_flags: <defaults>
</compile_context>

<pallas_src>
import functools

import jax
import jax.numpy as jnp
from jax.experimental import pallas as pl
from jax.experimental.pallas import tpu as pltpu

NEG_FILL = -1000000000.0


def _local_l2_kernel(lhs_ref, rhs_ref, out_ref, *, off):
    # lhs_ref: (1, TN, dim)  rows [i*TN, (i+1)*TN) of lhs[b]
    # rhs_ref: (1, TN, dim)  matching rows of rhs[:, N_-N:, :]
    # out_ref: (1, TN, TC)   cols [j*TC, (j+1)*TC) of out[b]
    i = pl.program_id(1)
    j = pl.program_id(2)
    tn = out_ref.shape[1]
    tc = out_ref.shape[2]

    # Diagonal band touched by this row tile: global cols [band_lo, band_hi)
    band_lo = off + i * tn
    band_hi = band_lo + tn
    col_lo = j * tc
    col_hi = col_lo + tc
    on_diag = jnp.logical_and(band_lo < col_hi, band_hi > col_lo)

    @pl.when(jnp.logical_not(on_diag))
    def _():
        # Vast majority of tiles: bare constant store, zero per-element VPU work.
        out_ref[...] = jnp.full(out_ref.shape, NEG_FILL, dtype=out_ref.dtype)

    @pl.when(on_diag)
    def _():
        lhs = lhs_ref[0].astype(jnp.float32)          # (TN, dim)
        rhs = rhs_ref[0].astype(jnp.float32)          # (TN, dim)
        diff = lhs - rhs
        sim = jnp.sqrt(jnp.sum(diff * diff, axis=-1, keepdims=True))  # (TN, 1)

        # Global row/col ids for this tile; place sim at col == row + off.
        row_g = jax.lax.broadcasted_iota(jnp.int32, (tn, tc), 0) + i * tn
        col_g = jax.lax.broadcasted_iota(jnp.int32, (tn, tc), 1) + col_lo
        mask = col_g == (row_g + off)
        out_ref[0] = jnp.where(mask, sim, jnp.float32(NEG_FILL))


def _largest_divisor_tile(size, align, cap):
    """Largest multiple of `align` that divides `size`, capped at `cap`.

    Falls back to the full extent (always a legal block dim)."""
    t = min(cap, size)
    t -= t % align
    while t >= align:
        if size % t == 0:
            return t
        t -= align
    return size


def local_l2_similarity(lhs, rhs):
    B, N, dim = lhs.shape
    Br, N_, dim_r = rhs.shape
    assert B == Br and dim == dim_r and N_ >= N
    off = N_ - N

    # Only the tail rows of rhs are ever read.
    rhs_tail = rhs[:, off:, :] if off > 0 else rhs

    # Row tile: multiple of 8 (<=256); column tile: lane-dense multiple of 128
    # (<=1024).  Both fall back to the full extent for small/odd shapes.
    tn = _largest_divisor_tile(N, 8, 256)
    tc = _largest_divisor_tile(N_, 128, 1024)
    grid = (B, N // tn, N_ // tc)

    kernel = functools.partial(_local_l2_kernel, off=off)

    cost = pl.CostEstimate(
        flops=3 * B * N * dim,
        transcendentals=B * N,
        bytes_accessed=4 * (B * N * N_ + 2 * B * N * dim),
    )

    return pl.pallas_call(
        kernel,
        out_shape=jax.ShapeDtypeStruct((B, N, N_), jnp.float32),
        grid_spec=pltpu.PrefetchScalarGridSpec(
            num_scalar_prefetch=0,
            grid=grid,
            in_specs=[
                # index maps ignore j: Pallas skips the re-fetch while the
                # inner (column) axis sweeps.
                pl.BlockSpec((1, tn, dim), lambda b, i, j: (b, i, 0)),
                pl.BlockSpec((1, tn, dim), lambda b, i, j: (b, i, 0)),
            ],
            out_specs=pl.BlockSpec((1, tn, tc), lambda b, i, j: (b, i, j)),
        ),
        compiler_params=pltpu.CompilerParams(
            dimension_semantics=("parallel", "parallel", "arbitrary"),
        ),
        cost_estimate=cost,
    )(lhs, rhs_tail)


def _reference(lhs, rhs):
    B, N, dim = lhs.shape
    _, N_, _ = rhs.shape
    diff = lhs - rhs[:, -N:]
    sim = jnp.sqrt(jnp.sum(diff * diff, axis=-1))
    ret = jnp.full((B, N, N_), NEG_FILL, dtype=jnp.float32)
    rows = jnp.arange(N)
    cols = (N_ - N) + rows
    ret = ret.at[:, rows, cols].set(sim)
    return ret


if __name__ == "__main__":
    key = jax.random.PRNGKey(0)

    # Small smoke test (matches the module's implied layout).
    k1, k2 = jax.random.split(key)
    B, N, N_, dim = 2, 8, 12, 32
    lhs = jax.random.normal(k1, (B, N, dim), dtype=jnp.float32)
    rhs = jax.random.normal(k2, (B, N_, dim), dtype=jnp.float32)
    out = local_l2_similarity(lhs, rhs)
    jax.block_until_ready(out)
    ref = _reference(lhs, rhs)
    assert out.shape == (B, N, N_)
    assert jnp.allclose(out, ref, atol=1e-5, rtol=1e-5), "mismatch vs reference (small)"

    # Second check exercising the tiled path (lane-dense column tiles,
    # fill-only tiles, and the pl.when diagonal gate).
    k3, k4 = jax.random.split(k2)
    B2, N2, N2_, dim2 = 1, 128, 2048, 64
    lhs2 = jax.random.normal(k3, (B2, N2, dim2), dtype=jnp.float32)
    rhs2 = jax.random.normal(k4, (B2, N2_, dim2), dtype=jnp.float32)
    out2 = local_l2_similarity(lhs2, rhs2)
    jax.block_until_ready(out2)
    ref2 = _reference(lhs2, rhs2)
    assert out2.shape == (B2, N2, N2_)
    assert jnp.allclose(out2, ref2, atol=1e-5, rtol=1e-5), "mismatch vs reference (tiled)"

    print("KERNEL_OK")
</pallas_src>

<mosaic_0001>
module attributes {stable_mosaic.version = 11 : i64} {
  func.func @_local_l2_kernel(%arg0: i32, %arg1: i32, %arg2: i32, %arg3: memref<1x8x32xf32, #tpu.memory_space<vmem>>, %arg4: memref<1x8x32xf32, #tpu.memory_space<vmem>>, %arg5: memref<1x8x12xf32, #tpu.memory_space<vmem>>) attributes {dimension_semantics = [#tpu.dimension_semantics<parallel>, #tpu.dimension_semantics<parallel>, #tpu.dimension_semantics<arbitrary>], iteration_bounds = array<i64: 2, 1, 1>, scalar_prefetch = 0 : i64, scratch_operands = 0 : i64, tpu.core_type = #tpu.core_type<tc>, window_params = [{transform_indices = @transform_0, window_bounds = array<i64: 1, 8, 32>}, {transform_indices = @transform_1, window_bounds = array<i64: 1, 8, 32>}, {transform_indices = @transform_2, window_bounds = array<i64: 1, 8, 12>}]} {
    %c8_i32 = arith.constant 8 : i32
    %0 = arith.muli %arg1, %c8_i32 : i32
    %c4_i32 = arith.constant 4 : i32
    %1 = arith.addi %c4_i32, %0 : i32
    %c8_i32_0 = arith.constant 8 : i32
    %2 = arith.addi %1, %c8_i32_0 : i32
    %c12_i32 = arith.constant 12 : i32
    %3 = arith.muli %arg2, %c12_i32 : i32
    %c12_i32_1 = arith.constant 12 : i32
    %4 = arith.addi %3, %c12_i32_1 : i32
    %5 = arith.cmpi slt, %1, %4 : i32
    %6 = arith.cmpi sgt, %2, %3 : i32
    %7 = arith.andi %5, %6 : i1
    %true = arith.constant true
    %8 = arith.xori %7, %true : i1
    %9 = arith.extui %8 : i1 to i32
    %c0_i32 = arith.constant 0 : i32
    %10 = arith.cmpi ne, %9, %c0_i32 : i32
    scf.if %10 {
      %cst = arith.constant -1.000000e+09 : f32
      %13 = vector.broadcast %cst : f32 to vector<1x8x12xf32>
      %c0 = arith.constant 0 : index
      %c0_3 = arith.constant 0 : index
      %c0_4 = arith.constant 0 : index
      %14 = vector.load %arg5[%c0, %c0_3, %c0_4] : memref<1x8x12xf32, #tpu.memory_space<vmem>>, vector<1x8x12xf32>
      tpu.vector_store %arg5[%c0, %c0_3, %c0_4], %13 {strides = array<i32>} : memref<1x8x12xf32, #tpu.memory_space<vmem>>, vector<1x8x12xf32>,
    } else {
    }
    %11 = arith.extui %7 : i1 to i32
    %c0_i32_2 = arith.constant 0 : i32
    %12 = arith.cmpi ne, %11, %c0_i32_2 : i32
    scf.if %12 {
      %c0 = arith.constant 0 : index
      %c0_3 = arith.constant 0 : index
      %c0_4 = arith.constant 0 : index
      %13 = vector.load %arg3[%c0, %c0_3, %c0_4] : memref<1x8x32xf32, #tpu.memory_space<vmem>>, vector<1x8x32xf32>
      %14 = vector.shape_cast %13 : vector<1x8x32xf32> to vector<8x32xf32>
      %c0_5 = arith.constant 0 : index
      %c0_6 = arith.constant 0 : index
      %c0_7 = arith.constant 0 : index
      %15 = vector.load %arg4[%c0_5, %c0_6, %c0_7] : memref<1x8x32xf32, #tpu.memory_space<vmem>>, vector<1x8x32xf32>
      %16 = vector.shape_cast %15 : vector<1x8x32xf32> to vector<8x32xf32>
      %17 = arith.subf %14, %16 : vector<8x32xf32>
      %18 = arith.mulf %17, %17 : vector<8x32xf32>
      %cst = arith.constant dense<0.000000e+00> : vector<8xf32>
      %19 = vector.multi_reduction <add>, %18, %cst [1] : vector<8x32xf32> to vector<8xf32>
      %20 = vector.shape_cast %19 : vector<8xf32> to vector<8x1xf32>
      %21 = math.sqrt %20 : vector<8x1xf32>
      %22 = tpu.iota {dimensions = array<i32: 0>} : vector<8x12xi32>
      %c8_i32_8 = arith.constant 8 : i32
      %23 = arith.muli %arg1, %c8_i32_8 : i32
      %24 = vector.broadcast %23 : i32 to vector<8x12xi32>
      %25 = arith.addi %22, %24 : vector<8x12xi32>
      %26 = tpu.iota {dimensions = array<i32: 1>} : vector<8x12xi32>
      %27 = vector.broadcast %3 : i32 to vector<8x12xi32>
      %28 = arith.addi %26, %27 : vector<8x12xi32>
      %c4_i32_9 = arith.constant 4 : i32
      %29 = vector.broadcast %c4_i32_9 : i32 to vector<8x12xi32>
      %30 = arith.addi %25, %29 : vector<8x12xi32>
      %31 = arith.cmpi eq, %28, %30 : vector<8x12xi32>
      %cst_10 = arith.constant -1.000000e+09 : f32
      %32 = vector.shape_cast %21 : vector<8x1xf32> to vector<8x1xf32>
      %33 = vector.broadcast %32 : vector<8x1xf32> to vector<8x12xf32>
      %34 = vector.broadcast %cst_10 : f32 to vector<8x12xf32>
      %35 = arith.select %31, %33, %34 : vector<8x12xi1>, vector<8x12xf32>
      %c0_11 = arith.constant 0 : index
      %c0_12 = arith.constant 0 : index
      %c0_13 = arith.constant 0 : index
      %36 = vector.load %arg5[%c0_11, %c0_12, %c0_13] : memref<1x8x12xf32, #tpu.memory_space<vmem>>, vector<1x8x12xf32>
      %37 = vector.shape_cast %36 : vector<1x8x12xf32> to vector<8x12xf32>
      %38 = vector.shape_cast %35 : vector<8x12xf32> to vector<1x8x12xf32>
      tpu.vector_store %arg5[%c0_11, %c0_12, %c0_13], %38 {strides = array<i32>} : memref<1x8x12xf32, #tpu.memory_space<vmem>>, vector<1x8x12xf32>,
    } else {
    }
    return
  }
  func.func @transform_0(%arg0: i32, %arg1: i32, %arg2: i32) -> (i32, i32, i32) {
    %c0_i32 = arith.constant 0 : i32
    %c0_i32_0 = arith.constant 0 : i32
    return %arg0, %arg1, %c0_i32 : i32, i32, i32
  }
  func.func @transform_1(%arg0: i32, %arg1: i32, %arg2: i32) -> (i32, i32, i32) {
    %c0_i32 = arith.constant 0 : i32
    %c0_i32_0 = arith.constant 0 : i32
    return %arg0, %arg1, %c0_i32 : i32, i32, i32
  }
  func.func @transform_2(%arg0: i32, %arg1: i32, %arg2: i32) -> (i32, i32, i32) {
    %c0_i32 = arith.constant 0 : i32
    return %arg0, %arg1, %arg2 : i32, i32, i32
  }
}

</mosaic_0001>

<llo_original>
// kernel: tpu_custom_call.1
$region0: #{tpu_custom_call.1}
  #allocation0 [shape = 'u32[]', space=smem, size = 0x4, offset = 0x4, fixed_abs, tag = 'smem constant byte address 0x4 - core index']
  #allocation1 [shape = 'u32[144,128]{1,0:T(1,128)}', space=vmem, size = 0x12000, scoped, tag = 'internal scratch']
  %s0 = inlined_call_operand.hbm [shape: f32[2,8,32], index: 0, kind: input, shape index: {}]
  %s1 = inlined_call_operand.hbm [shape: f32[2,8,32], index: 1, kind: input, shape index: {}]
  %s2 = inlined_call_operand.hbm [shape: f32[2,8,12], index: 2, kind: output, shape index: {}]
  %s3 = sld [smem:[#allocation0]]
  $region57: #{tpu_custom_call.1} parent=0
    _
  %s5 = ssub.s32 1, %s3
  %s6 = scalar_select 0, %s5, %s3
  $region1: #{tpu_custom_call.1} parent=0
    #allocation2 [shape = 'u8[8192]{0}', space=vmem, size = 0x2000, scoped, tag = 'input window, operand 0']
    #allocation3 [shape = 's32[2]{0}', space=sflag, size = 0x8, scoped, tag = 'scoped memory for tpu_custom_call.1']
    #allocation4 [shape = 's32[2]{0}', space=sflag, size = 0x8, scoped, tag = 'scoped memory for tpu_custom_call.1']
    #allocation5 [shape = 'u8[8192]{0}', space=vmem, size = 0x2000, scoped, tag = 'input window, operand 1']
    #allocation6 [shape = 's32[2]{0}', space=sflag, size = 0x8, scoped, tag = 'scoped memory for tpu_custom_call.1']
    #allocation7 [shape = 'u8[8192]{0}', space=vmem, size = 0x2000, scoped, tag = 'output window, operand 0']
    %7 = vsyncpa [#allocation3], 0
    %s8 = scalar_lea.sflag [#allocation3], 1
    %9 = vsyncpa %s8, 0
    %10 = vsyncpa [#allocation6], 0
    %s11 = scalar_lea.sflag [#allocation6], 1
    %12 = vsyncpa %s11, 0
    %13 = vsyncpa [#allocation4], 0
    %s14 = scalar_lea.sflag [#allocation4], 1
    %15 = vsyncpa %s14, 0
    loop: start=0, step=1, limit=4
    $region2: #{tpu_custom_call.1} parent=1 // loop_pre_header
      _
    $region3: #{tpu_custom_call.1} parent=1 // loop_header
      %s17 = sphi 0, %s21
      %p18 = scmp.ge.s32.totalorder %s17, 4
      %s24 = sphi 0, %s43
      %s25 = sphi 0, %s39
      %s26 = sphi 0, %s35
      %s27 = sphi 0, %s24
      %s28 = sphi 0, %s25
      %s29 = sphi 0, %s26
      %s30 = sphi 0, %s27
      %s31 = sphi 0, %s28
      %s32 = sphi 0, %s29
      %s48 = sphi 0, %s50
      %s51 = sphi 0, %s48
      %s52 = sphi 0, %s51
      %s68 = sphi 0, %s52
      %s76 = sphi 0, %s78
      %s79 = sphi 0, %s76
      %s80 = sphi 0, %s79
      %s96 = sphi 0, %s80
      %s106 = sphi 0, %s108
      %s109 = sphi 0, %s106
      %s110 = sphi 0, %s109
      %s126 = sphi 0, %s110
    $region4: #{tpu_custom_call.1} parent=1 // loop_header_branch
      %20 = sbr.rel (%p18) target = $region8
    $region5: #{tpu_custom_call.1} parent=1 // loop_body
      %s22 = ssub.s32 %s17, 1
      %s23 = ssub.s32 %s17, 2
      %s33 = sadd.s32 1, %s26
      %p34 = scmp.ge.s32.totalorder %s33, 1
      %s35 = scalar_select %p34, 0, %s33
      %s36 = sadd.s32 1, %s25
      %s37 = scalar_select %p34, %s36, %s25
      %p38 = scmp.ge.s32.totalorder %s37, 1
      %s39 = scalar_select %p38, 0, %s37
      %s40 = sadd.s32 1, %s24
      %s41 = scalar_select %p38, %s40, %s24
      %p42 = scmp.ge.s32.totalorder %s41, 2
      %s43 = scalar_select %p42, 0, %s41
      %s44 = ssub.s32 %s24, %s43
      %s45 = ssub.s32 %s25, %s39
      %s46 = sor.u32 %s44, %s45
      %p47 = scmp.eq.s32.totalorder %s46, 0
      %s49 = sadd.s32 %s48, 1
      %s50 = scalar_select %p47, %s48, %s49
      %p53 = pneg %p47
      %p54 = scmp.eq.s32.totalorder %s17, 1
      %p55 = por %p53, %p54
      %p56 = scmp.ne.s32.totalorder %s48, %s51
      %p57 = scmp.eq.s32.totalorder %s17, 0
      %p58 = por %p56, %p57
      %p59 = scmp.ne.s32.totalorder %s48, %s51
      %p60 = scmp.eq.s32.totalorder %s22, 1
      %p61 = por %p59, %p60
      %p62 = scmp.ne.s32.totalorder %s51, %s52
      %p63 = scmp.eq.s32.totalorder %s22, 0
      %p64 = por %p62, %p63
      %p65 = scmp.ne.s32.totalorder %s51, %s52
      %p66 = scmp.eq.s32.totalorder %s23, 1
      %p67 = por %p65, %p66
      %p69 = scmp.ne.s32.totalorder %s52, %s68
      %p70 = scmp.eq.s32.totalorder %s23, 0
      %p71 = por %p69, %p70
      %s72 = ssub.s32 %s24, %s43
      %s73 = ssub.s32 %s25, %s39
      %s74 = sor.u32 %s72, %s73
      %p75 = scmp.eq.s32.totalorder %s74, 0
      %s77 = sadd.s32 %s76, 1
      %s78 = scalar_select %p75, %s76, %s77
      %p81 = pneg %p75
      %p82 = scmp.eq.s32.totalorder %s17, 1
      %p83 = por %p81, %p82
      %p84 = scmp.ne.s32.totalorder %s76, %s79
      %p85 = scmp.eq.s32.totalorder %s17, 0
      %p86 = por %p84, %p85
      %p87 = scmp.ne.s32.totalorder %s76, %s79
      %p88 = scmp.eq.s32.totalorder %s22, 1
      %p89 = por %p87, %p88
      %p90 = scmp.ne.s32.totalorder %s79, %s80
      %p91 = scmp.eq.s32.totalorder %s22, 0
      %p92 = por %p90, %p91
      %p93 = scmp.ne.s32.totalorder %s79, %s80
      %p94 = scmp.eq.s32.totalorder %s23, 1
      %p95 = por %p93, %p94
      %p97 = scmp.ne.s32.totalorder %s80, %s96
      %p98 = scmp.eq.s32.totalorder %s23, 0
      %p99 = por %p97, %p98
      %s100 = ssub.s32 %s24, %s43
      %s101 = ssub.s32 %s25, %s39
      %s102 = sor.u32 %s100, %s101
      %s103 = ssub.s32 %s26, %s35
      %s104 = sor.u32 %s102, %s103
      %p105 = scmp.eq.s32.totalorder %s104, 0
      %s107 = sadd.s32 %s106, 1
      %s108 = scalar_select %p105, %s106, %s107
      %p111 = pneg %p105
      %p112 = scmp.eq.s32.totalorder %s17, 1
      %p113 = por %p111, %p112
      %p114 = scmp.ne.s32.totalorder %s106, %s109
      %p115 = scmp.eq.s32.totalorder %s17, 0
      %p116 = por %p114, %p115
      %p117 = scmp.ne.s32.totalorder %s106, %s109
      %p118 = scmp.eq.s32.totalorder %s22, 1
      %p119 = por %p117, %p118
      %p120 = scmp.ne.s32.totalorder %s109, %s110
      %p121 = scmp.eq.s32.totalorder %s22, 0
      %p122 = por %p120, %p121
      %p123 = scmp.ne.s32.totalorder %s109, %s110
      %p124 = scmp.eq.s32.totalorder %s23, 1
      %p125 = por %p123, %p124
      %p127 = scmp.ne.s32.totalorder %s110, %s126
      %p128 = scmp.eq.s32.totalorder %s23, 0
      %p129 = por %p127, %p128
      %p130 = scmp.le.s32.totalorder 1, %s17
      %p131 = scmp.lt.s32.totalorder %s17, 3
      %p132 = pnand %p130, %p131
      %p133 = pneg %p132
      // Predicated region
      $region9: #{tpu_custom_call.1} parent=5 // pred_check
        _
      $region10: #{tpu_custom_call.1} parent=5 // pred_check_branch
        %135 = sbr.rel (%p132) target = $region12
      $region11: #{tpu_custom_call.1} parent=5 // pred_region
        %s136 = ssub.s32 %s17, 1
      $region12: #{tpu_custom_call.1} parent=5 // pred_fallthru
        _
      %p137 = scmp.lt.s32.totalorder %s17, 2
      // Predicated region
      $region13: #{tpu_custom_call.1} parent=5 // pred_check
        %p138 = pneg %p137
      $region14: #{tpu_custom_call.1} parent=5 // pred_check_branch
        %140 = sbr.rel (%p138) target = $region16
      $region15: #{tpu_custom_call.1} parent=5 // pred_region
        // Predicated region
        $region17: #{tpu_custom_call.1} parent=15 // pred_check
          %p141 = pneg %p58
        $region18: #{tpu_custom_call.1} parent=15 // pred_check_branch
          %143 = sbr.rel (%p141) target = $region20
        $region19: #{tpu_custom_call.1} parent=15 // pred_region
          %s144 = sand.u32 %s48, 1
          %s145 = scalar_lea.sflag [#allocation3], %s144
          %s146 = sand.u32 %s48, 1
          %s147 = smul.addr %s146, 8
          %s148 = scalar_lea.vmem [#allocation2], %s147
          %s150 = ssub.s32 128, 128
          %151 = vsyncadd %s145, %s150
          %s152 = sadd.s32 %s25, %s24
          %s153 = smul.addr %s152, 128
          %s154 = scalar_lea.hbm %s0, %s153
          %s156 = sshll.u32 %s148, 4
          %s157 = int_to_ptr.vmem [resolvable:$true] %s156
          %159 = dma.hbm_to_vmem [thread:$0]  %s154, 128, %s157, %s145
        $region20: #{tpu_custom_call.1} parent=15 // pred_fallthru
          _
        // Predicated region
        $region21: #{tpu_custom_call.1} parent=15 // pred_check
          %p160 = pneg %p86
        $region22: #{tpu_custom_call.1} parent=15 // pred_check_branch
          %162 = sbr.rel (%p160) target = $region24
        $region23: #{tpu_custom_call.1} parent=15 // pred_region
          %s163 = sand.u32 %s76, 1
          %s164 = scalar_lea.sflag [#allocation6], %s163
          %s165 = sand.u32 %s76, 1
          %s166 = smul.addr %s165, 8
          %s167 = scalar_lea.vmem [#allocation5], %s166
          %s169 = ssub.s32 128, 128
          %170 = vsyncadd %s164, %s169
          %s171 = sadd.s32 %s25, %s24
          %s172 = smul.addr %s171, 128
          %s173 = scalar_lea.hbm %s1, %s172
          %s175 = sshll.u32 %s167, 4
          %s176 = int_to_ptr.vmem [resolvable:$true] %s175
          %178 = dma.hbm_to_vmem [thread:$0]  %s173, 128, %s176, %s164
        $region24: #{tpu_custom_call.1} parent=15 // pred_fallthru
          _
      $region16: #{tpu_custom_call.1} parent=5 // pred_fallthru
        _
      %p179 = scmp.le.s32.totalorder 1, %s17
      %p180 = scmp.lt.s32.totalorder %s17, 3
      %p181 = pnand %p179, %p180
      %p182 = pneg %p181
      // Predicated region
      $region25: #{tpu_custom_call.1} parent=5 // pred_check
        _
      $region26: #{tpu_custom_call.1} parent=5 // pred_check_branch
        %184 = sbr.rel (%p181) target = $region28
      $region27: #{tpu_custom_call.1} parent=5 // pred_region
        %s185 = ssub.s32 %s17, 1
        %s186 = sand.u32 %s51, 1
        %s187 = scalar_lea.sflag [#allocation3], %s186
        %s188 = sand.u32 %s51, 1
        %s189 = smul.addr %s188, 8
        %s190 = scalar_lea.vmem [#allocation2], %s189
        // Predicated region
        $region29: #{tpu_custom_call.1} parent=27 // pred_check
          %p191 = pneg %p64
        $region30: #{tpu_custom_call.1} parent=27 // pred_check_branch
          %193 = sbr.rel (%p191) target = $region32
        $region31: #{tpu_custom_call.1} parent=27 // pred_region
          %194 = dma.done %s187, 128
        $region32: #{tpu_custom_call.1} parent=27 // pred_fallthru
          _
        %s195 = sand.u32 %s79, 1
        %s196 = scalar_lea.sflag [#allocation6], %s195
        %s197 = sand.u32 %s79, 1
        %s198 = smul.addr %s197, 8
        %s199 = scalar_lea.vmem [#allocation5], %s198
        // Predicated region
        $region33: #{tpu_custom_call.1} parent=27 // pred_check
          %p200 = pneg %p92
        $region34: #{tpu_custom_call.1} parent=27 // pred_check_branch
          %202 = sbr.rel (%p200) target = $region36
        $region35: #{tpu_custom_call.1} parent=27 // pred_region
          %203 = dma.done %s196, 128
        $region36: #{tpu_custom_call.1} parent=27 // pred_fallthru
          _
        %s204 = sand.u32 %s51, 1
        %s205 = scalar_lea.sflag [#allocation3], %s204
        %s206 = sand.u32 %s51, 1
        %s207 = smul.addr %s206, 8
        %s208 = scalar_lea.vmem [#allocation2], %s207
        %p209 = pneg %p64
        %p210 = pneg %p61
        %s211 = sand.u32 %s79, 1
        %s212 = scalar_lea.sflag [#allocation6], %s211
        %s213 = sand.u32 %s79, 1
        %s214 = smul.addr %s213, 8
        %s215 = scalar_lea.vmem [#allocation5], %s214
        %p216 = pneg %p92
        %p217 = pneg %p89
        %p218 = pneg %p122
        %p219 = pneg %p119
        %s220 = sand.u32 %s109, 1
        %s221 = scalar_lea.sflag [#allocation4], %s220
        %s222 = sand.u32 %s109, 1
        %s223 = smul.addr %s222, 8
        %s224 = scalar_lea.vmem [#allocation7], %s223
        %s225 = smul.u32 %s28, 8
        %s226 = sadd.s32 %s225, 4
        %s227 = sadd.s32 %s225, 12
        %s228 = smul.u32 %s29, 12
        %s229 = sadd.s32 %s228, 12
        %p230 = scmp.lt.s32.totalorder %s226, %s229
        %p231 = scmp.gt.s32.totalorder %s227, %s228
        %p232 = pnand %p230, %p231
        %p233 = pneg %p232
        // Predicated region
        $region37: #{tpu_custom_call.1} parent=27 // pred_check
          _
        $region38: #{tpu_custom_call.1} parent=27 // pred_check_branch
          %235 = sbr.rel (%p232) target = $region40
        $region39: #{tpu_custom_call.1} parent=27 // pred_region
          %v236 = vld [vmem:[%s190] sm:$0xff]
          %v237 = vld [vmem:[%s199] sm:$0xff]
          %v238 = vsub.f32 %v236, %v237
          %v239 = vmul.f32 %v238, %v238
          %vm240 = vcmask 261120
          %v241 = vsel %vm240, %v239, 0.0
          %242 = vadd.xlane.f32.xlu0 %v241
          %v243 = vpop.xlane.xlu0 %242
          %v244 = vrsqrt.pop %v243
          %v245 = vmul.f32 %v243, %v244
          %vm246 = vcmp.eq.f32.partialorder %v243, inf
          %v247 = vsel %vm246, %v243, %v245
          %vm248 = vcmp.eq.f32.partialorder %v243, 0.0
          %v249 = vand.u32 %v243, 2147483648
          %v250 = vsel %vm248, %v249, %v247
          %v251 = vlaneseq
          %v252 = vshrl.u32 %v251, 7
          %v253 = vstv %s225
          %v254 = vadd.s32 %v252, %v253
          %v255 = vlaneseq
          %v256 = vand.u32 %v255, 127
          %v257 = vstv %s228
          %v258 = vadd.s32 %v256, %v257
          %v259 = vadd.s32 %v254, 4
          %vm260 = vcmp.eq.s32.totalorder %v258, %v259
          %v261 = vsel %vm260, %v250, -1e+09
          %vm262 = vcmask 97280
          %263 = vst.msk [vmem:[%s224] sm:$0xff] %vm262, %v261
        $region40: #{tpu_custom_call.1} parent=27 // pred_fallthru
          _
        // Predicated region
        $region41: #{tpu_custom_call.1} parent=27 // pred_check
          %p264 = pneg %p232
        $region42: #{tpu_custom_call.1} parent=27 // pred_check_branch
          %266 = sbr.rel (%p264) target = $region44
        $region43: #{tpu_custom_call.1} parent=27 // pred_region
          %vm267 = vcmask 97280
          %268 = vst.msk [vmem:[%s224] sm:$0xff] %vm267, -1e+09
        $region44: #{tpu_custom_call.1} parent=27 // pred_fallthru
          _
        %s269 = sand.u32 %s109, 1
        %s270 = scalar_lea.sflag [#allocation4], %s269
        %s271 = sand.u32 %s109, 1
        %s272 = smul.addr %s271, 8
        %s273 = scalar_lea.vmem [#allocation7], %s272
        // Predicated region
        $region45: #{tpu_custom_call.1} parent=27 // pred_check
          %p274 = pneg %p119
        $region46: #{tpu_custom_call.1} parent=27 // pred_check_branch
          %276 = sbr.rel (%p274) target = $region48
        $region47: #{tpu_custom_call.1} parent=27 // pred_region
          %s278 = ssub.s32 128, 128
          %279 = vsyncadd %s270, %s278
          %s280 = sadd.s32 %s29, %s28
          %s281 = sadd.s32 %s280, %s27
          %s282 = smul.addr %s281, 128
          %s283 = scalar_lea.hbm %s2, %s282
          %s285 = sshll.u32 %s273, 4
          %s286 = int_to_ptr.vmem [resolvable:$true] %s285
          %288 = dma.vmem_to_hbm [thread:$0]  %s286, 128, %s283, %s270
        $region48: #{tpu_custom_call.1} parent=27 // pred_fallthru
          _
      $region28: #{tpu_custom_call.1} parent=5 // pred_fallthru
        _
      %p289 = scmp.le.s32.totalorder 2, %s17
      // Predicated region
      $region49: #{tpu_custom_call.1} parent=5 // pred_check
        %p290 = pneg %p289
      $region50: #{tpu_custom_call.1} parent=5 // pred_check_branch
        %292 = sbr.rel (%p290) target = $region52
      $region51: #{tpu_custom_call.1} parent=5 // pred_region
        %s293 = ssub.s32 %s17, 2
        // Predicated region
        $region53: #{tpu_custom_call.1} parent=51 // pred_check
          %p294 = pneg %p125
        $region54: #{tpu_custom_call.1} parent=51 // pred_check_branch
          %296 = sbr.rel (%p294) target = $region56
        $region55: #{tpu_custom_call.1} parent=51 // pred_region
          %s297 = sand.u32 %s110, 1
          %s298 = scalar_lea.sflag [#allocation4], %s297
          %s299 = sand.u32 %s110, 1
          %s300 = smul.addr %s299, 8
          %s301 = scalar_lea.vmem [#allocation7], %s300
          %302 = dma.done %s298, 128
        $region56: #{tpu_custom_call.1} parent=51 // pred_fallthru
          _
      $region52: #{tpu_custom_call.1} parent=5 // pred_fallthru
        _
    $region6: #{tpu_custom_call.1} parent=1 // loop_footer
      %s21 = sadd.s32 1, %s17
    $region7: #{tpu_custom_call.1} parent=1 // loop_footer_branch
      %16 = sbr.rel target = $region3
    $region8: #{tpu_custom_call.1} parent=1 // loop_exit
      _
    %303 = vsyncpa [#allocation3], 1
    %s304 = scalar_lea.sflag [#allocation3], 1
    %305 = vsyncpa %s304, 1
    %306 = vsyncpa [#allocation6], 1
    %s307 = scalar_lea.sflag [#allocation6], 1
    %308 = vsyncpa %s307, 1
    %309 = vsyncpa [#allocation4], 1
    %s310 = scalar_lea.sflag [#allocation4], 1
    %311 = vsyncpa %s310, 1

</llo_original>
